<compile_context>
chip_gen: v7x
topology: tpu7x:2x2x1
jax: 0.10.0
libtpu: 0.0.40
codegen_flags: <defaults>
</compile_context>

<pallas_src>
import functools

import jax
import jax.numpy as jnp
from jax.experimental import pallas as pl
from jax.experimental.pallas import tpu as pltpu


def _round_up(x, m):
    return ((x + m - 1) // m) * m


def _quantize_kernel(x_ref, expand_ref, shift_ref, o_ref, *, step):
    # x_ref:      (tm, N)   f32  raw encoder outputs (sigmoid range)
    # expand_ref: (N, N*B)  f32  0/1 expansion matrix: column n*B+j == e_n
    # shift_ref:  (1, N*B)  i32  bit position per output column ([B-1..0] per value)
    # o_ref:      (tm, N*B) f32  bits, already in the final interleaved layout
    num = jnp.round(x_ref[...] * step - 0.5)          # integer-valued f32 (VPU)
    # Lane replication on the MXU: exactly one 1.0 per output column, and `num`
    # holds small integers, so the product/accumulation is exact.
    rep = jnp.dot(num, expand_ref[...],
                  preferred_element_type=jnp.float32,
                  precision=jax.lax.Precision.HIGHEST)
    bits = jnp.right_shift(rep.astype(jnp.int32), shift_ref[...]) & jnp.int32(1)
    o_ref[...] = bits.astype(jnp.float32)


def quantization_layer(x, B):
    """Pallas TPU forward of QuantizationLayer: x (M, N) -> bits (M, N*B) float32."""
    M, N = x.shape
    NB = N * B

    # Pad rows only to the sublane quantum (<= 7 rows, usually none at all).
    Mp = _round_up(M, 8)
    x_p = x.astype(jnp.float32)
    if Mp != M:
        x_p = jnp.pad(x_p, ((0, Mp - M), (0, 0)))  # zero rows -> 0-bits; sliced off below

    # Row-tile size from a VMEM budget: 2 buffers x f32 x (input row + output row).
    vmem_budget = 8 << 20                           # < v5e's 16 MiB scoped default
    per_row_bytes = 2 * 4 * (N + NB)
    tm_cap = max(8, min(8192, (vmem_budget // per_row_bytes) // 8 * 8))
    if Mp <= 16:
        tm = Mp
    else:
        # Keep at least two grid steps so the "parallel" axis can use both v7x TCs.
        tm = max(8, min(tm_cap, _round_up(pl.cdiv(Mp, 2), 8)))
    grid = pl.cdiv(Mp, tm)

    # Tiny constants (folded under jit): expansion matrix + per-column bit positions.
    expand = jnp.repeat(jnp.eye(N, dtype=jnp.float32), B, axis=1)              # (N, N*B)
    shifts = jnp.tile(jnp.arange(B - 1, -1, -1, dtype=jnp.int32), N).reshape(1, NB)

    out = pl.pallas_call(
        functools.partial(_quantize_kernel, step=float(2 ** B)),
        out_shape=jax.ShapeDtypeStruct((Mp, NB), jnp.float32),
        grid_spec=pltpu.PrefetchScalarGridSpec(
            num_scalar_prefetch=0,
            grid=(grid,),
            in_specs=[
                pl.BlockSpec((tm, N), lambda i: (i, 0)),
                pl.BlockSpec((N, NB), lambda i: (0, 0)),
                pl.BlockSpec((1, NB), lambda i: (0, 0)),
            ],
            out_specs=pl.BlockSpec((tm, NB), lambda i: (i, 0)),
        ),
        compiler_params=pltpu.CompilerParams(
            dimension_semantics=("parallel",)),
    )(x_p, expand, shifts)
    return out if Mp == M else out[:M]


def _num2bit_ref(x, B):
    """Plain-JAX port of Quantization.forward + Num2Bit, for verification."""
    step = 2 ** B
    num = jnp.round(x.astype(jnp.float32) * step - 0.5).astype(jnp.int32)
    exps = jnp.arange(B - 1, -1, -1, dtype=jnp.int32)   # low B bits, MSB first
    bits = (num[..., None] >> exps) & 1
    return bits.reshape(x.shape[0], -1).astype(jnp.float32)


# TODO(synk): Quantization.backward (straight-through bit-group averaging) is backward-pass
# only and is intentionally not implemented here.

if __name__ == "__main__":
    B = 4                        # module's quantization bit width
    batch, n_values = 2, 32      # feedback_bits = 128 -> encoder output width 32
    key = jax.random.PRNGKey(0)
    x = jax.random.uniform(key, (batch, n_values), jnp.float32)   # sigmoid-range inputs

    fwd = jax.jit(functools.partial(quantization_layer, B=B))
    y = fwd(x)
    jax.block_until_ready(y)
    assert y.shape == (batch, n_values * B)
    assert jnp.array_equal(y, _num2bit_ref(x, B)), "Pallas quantizer mismatch vs reference"
    assert bool(jnp.all((y == 0.0) | (y == 1.0)))

    # Exercise the multi-block grid + non-multiple-of-8 boundary path as well.
    x2 = jax.random.uniform(jax.random.PRNGKey(1), (20, n_values), jnp.float32)
    y2 = fwd(x2)
    jax.block_until_ready(y2)
    assert y2.shape == (20, n_values * B)
    assert jnp.array_equal(y2, _num2bit_ref(x2, B)), "Pallas quantizer mismatch (boundary path)"

    print("KERNEL_OK")
</pallas_src>

<mosaic_0001>
module attributes {stable_mosaic.version = 11 : i64} {
  func.func @_quantize_kernel(%arg0: i32, %arg1: memref<8x32xf32, #tpu.memory_space<vmem>>, %arg2: memref<32x128xf32, #tpu.memory_space<vmem>>, %arg3: memref<1x128xi32, #tpu.memory_space<vmem>>, %arg4: memref<8x128xf32, #tpu.memory_space<vmem>>) attributes {dimension_semantics = [#tpu.dimension_semantics<parallel>], iteration_bounds = array<i64: 1>, scalar_prefetch = 0 : i64, scratch_operands = 0 : i64, tpu.core_type = #tpu.core_type<tc>, window_params = [{transform_indices = @transform_0, window_bounds = array<i64: 8, 32>}, {pipeline_mode = #tpu.pipeline_mode<synchronous>, transform_indices = @transform_1, window_bounds = array<i64: 32, 128>}, {pipeline_mode = #tpu.pipeline_mode<synchronous>, transform_indices = @transform_2, window_bounds = array<i64: 1, 128>}, {transform_indices = @transform_3, window_bounds = array<i64: 8, 128>}]} {
    %c0 = arith.constant 0 : index
    %c0_0 = arith.constant 0 : index
    %0 = vector.load %arg1[%c0, %c0_0] : memref<8x32xf32, #tpu.memory_space<vmem>>, vector<8x32xf32>
    %cst = arith.constant 1.600000e+01 : f32
    %1 = vector.broadcast %cst : f32 to vector<8x32xf32>
    %2 = arith.mulf %0, %1 : vector<8x32xf32>
    %cst_1 = arith.constant 5.000000e-01 : f32
    %3 = vector.broadcast %cst_1 : f32 to vector<8x32xf32>
    %4 = arith.subf %2, %3 : vector<8x32xf32>
    %5 = math.roundeven %4 : vector<8x32xf32>
    %c0_2 = arith.constant 0 : index
    %c0_3 = arith.constant 0 : index
    %6 = vector.load %arg2[%c0_2, %c0_3] : memref<32x128xf32, #tpu.memory_space<vmem>>, vector<32x128xf32>
    %cst_4 = arith.constant dense<0.000000e+00> : vector<8x128xf32>
    %7 = tpu.matmul %5, %6, %cst_4 {dimension_numbers = #tpu.dot_dimension_numbers<[1], [0], [0], [1], [0, 0, 1, 1], [], []>, precision = #tpu.contract_precision<fp32>} : vector<8x32xf32>, vector<32x128xf32>, vector<8x128xf32> -> vector<8x128xf32>
    %8 = arith.fptosi %7 : vector<8x128xf32> to vector<8x128xi32>
    %c0_5 = arith.constant 0 : index
    %c0_6 = arith.constant 0 : index
    %9 = vector.load %arg3[%c0_5, %c0_6] : memref<1x128xi32, #tpu.memory_space<vmem>>, vector<1x128xi32>
    %10 = vector.broadcast %9 : vector<1x128xi32> to vector<8x128xi32>
    %11 = arith.shrsi %8, %10 : vector<8x128xi32>
    %c1_i32 = arith.constant 1 : i32
    %12 = vector.broadcast %c1_i32 : i32 to vector<8x128xi32>
    %13 = arith.andi %11, %12 : vector<8x128xi32>
    %14 = arith.sitofp %13 : vector<8x128xi32> to vector<8x128xf32>
    %c0_7 = arith.constant 0 : index
    %c0_8 = arith.constant 0 : index
    %15 = vector.load %arg4[%c0_7, %c0_8] : memref<8x128xf32, #tpu.memory_space<vmem>>, vector<8x128xf32>
    tpu.vector_store %arg4[%c0_7, %c0_8], %14 {strides = array<i32>} : memref<8x128xf32, #tpu.memory_space<vmem>>, vector<8x128xf32>,
    return
  }
  func.func @transform_0(%arg0: i32) -> (i32, i32) {
    %c0_i32 = arith.constant 0 : i32
    %c0_i32_0 = arith.constant 0 : i32
    return %arg0, %c0_i32 : i32, i32
  }
  func.func @transform_1(%arg0: i32) -> (i32, i32) {
    %c0_i32 = arith.constant 0 : i32
    %c0_i32_0 = arith.constant 0 : i32
    %c0_i32_1 = arith.constant 0 : i32
    return %c0_i32, %c0_i32_0 : i32, i32
  }
  func.func @transform_2(%arg0: i32) -> (i32, i32) {
    %c0_i32 = arith.constant 0 : i32
    %c0_i32_0 = arith.constant 0 : i32
    %c0_i32_1 = arith.constant 0 : i32
    return %c0_i32, %c0_i32_0 : i32, i32
  }
  func.func @transform_3(%arg0: i32) -> (i32, i32) {
    %c0_i32 = arith.constant 0 : i32
    %c0_i32_0 = arith.constant 0 : i32
    return %arg0, %c0_i32 : i32, i32
  }
}

</mosaic_0001>

<llo_original>
// kernel: tile.8
$region0: #{tile.8}
  #allocation0 [shape = 's32[1]{0}', space=sflag, size = 0x4, scoped, tag = 'scoped memory for tile.8']
  %s0 = inlined_call_operand.vmem [shape: s32[4], index: 0, kind: input, shape index: {}]
  %s1 = inlined_call_operand.vmem [shape: s32[32,4], index: 1, kind: output, shape index: {}]
  // Predicated region
  $region2: #{tile.8} parent=0 // pred_check
    _
  $region3: #{tile.8} parent=0 // pred_check_branch
    %3 = sbr.rel (0) target = $region5
  $region4: #{tile.8} parent=0 // pred_region
    _
  $region5: #{tile.8} parent=0 // pred_fallthru
    _
  %v4 = vld [vmem:[%s0] ss:$0 sm:$0xff]
  %5 = vst [vmem:[%s1] sm:$0xff] %v4
  %s6 = scalar_lea.vmem %s1, 8
  %7 = vst [vmem:[%s6] sm:$0xff] %v4
  %s8 = scalar_lea.vmem %s1, 16
  %9 = vst [vmem:[%s8] sm:$0xff] %v4
  %s10 = scalar_lea.vmem %s1, 24
  %11 = vst [vmem:[%s10] sm:$0xff] %v4

// kernel: tile.9
$region0: #{tile.9}
  %s0 = inlined_call_operand.vmem [shape: s32[32,4], index: 0, kind: input, shape index: {}]
  %s1 = inlined_call_operand.vmem [shape: s32[1,128], index: 1, kind: output, shape index: {}]
  $region1: #{tile.9} parent=0
    #allocation0 [shape = 'u8[4096]{0}', space=vmem, size = 0x1000, scoped, tag = 'scoped mem for output reshape']
    %v2 = vld [vmem:[%s0] sm:$0x1]
    %vm3 = vcmask 31744
    %4 = vst.msk [vmem:[#allocation0] sm:$0x1] %vm3, %v2
    %s5 = scalar_lea.vmem %s0, 31
    %v6 = vld [vmem:[%s5] sm:$0x1]
    %7 = vrot.lane.b32.xlu0 %v6, 124
    %v8 = vpop.permute.xlu0 %7
    %vm9 = vcmask 1048544
    %10 = vst.msk [vmem:[#allocation0] sm:$0x1] %vm9, %v8
    %s11 = scalar_lea.vmem %s0, 30
    %v12 = vld [vmem:[%s11] sm:$0x1]
    %13 = vrot.lane.b32.xlu0 %v12, 120
    %v14 = vpop.permute.xlu0 %13
    %vm15 = vcmask 1015744
    %16 = vst.msk [vmem:[#allocation0] sm:$0x1] %vm15, %v14
    %s17 = scalar_lea.vmem %s0, 29
    %v18 = vld [vmem:[%s17] sm:$0x1]
    %19 = vrot.lane.b32.xlu0 %v18, 116
    %v20 = vpop.permute.xlu0 %19
    %vm21 = vcmask 982944
    %22 = vst.msk [vmem:[#allocation0] sm:$0x1] %vm21, %v20
    %s23 = scalar_lea.vmem %s0, 28
    %v24 = vld [vmem:[%s23] sm:$0x1]
    %25 = vrot.lane.b32.xlu0 %v24, 112
    %v26 = vpop.permute.xlu0 %25
    %vm27 = vcmask 950144
    %28 = vst.msk [vmem:[#allocation0] sm:$0x1] %vm27, %v26
    %s29 = scalar_lea.vmem %s0, 27
    %v30 = vld [vmem:[%s29] sm:$0x1]
    %31 = vrot.lane.b32.xlu0 %v30, 108
    %v32 = vpop.permute.xlu0 %31
    %vm33 = vcmask 917344
    %34 = vst.msk [vmem:[#allocation0] sm:$0x1] %vm33, %v32
    %s35 = scalar_lea.vmem %s0, 26
    %v36 = vld [vmem:[%s35] sm:$0x1]
    %37 = vrot.lane.b32.xlu0 %v36, 104
    %v38 = vpop.permute.xlu0 %37
    %vm39 = vcmask 884544
    %40 = vst.msk [vmem:[#allocation0] sm:$0x1] %vm39, %v38
    %s41 = scalar_lea.vmem %s0, 25
    %v42 = vld [vmem:[%s41] sm:$0x1]
    %43 = vrot.lane.b32.xlu0 %v42, 100
    %v44 = vpop.permute.xlu0 %43
    %vm45 = vcmask 851744
    %46 = vst.msk [vmem:[#allocation0] sm:$0x1] %vm45, %v44
    %s47 = scalar_lea.vmem %s0, 24
    %v48 = vld [vmem:[%s47] sm:$0x1]
    %49 = vrot.lane.b32.xlu0 %v48, 96
    %v50 = vpop.permute.xlu0 %49
    %vm51 = vcmask 818944
    %52 = vst.msk [vmem:[#allocation0] sm:$0x1] %vm51, %v50
    %s53 = scalar_lea.vmem %s0, 23
    %v54 = vld [vmem:[%s53] sm:$0x1]
    %55 = vrot.lane.b32.xlu0 %v54, 92
    %v56 = vpop.permute.xlu0 %55
    %vm57 = vcmask 786144
    %58 = vst.msk [vmem:[#allocation0] sm:$0x1] %vm57, %v56
    %s59 = scalar_lea.vmem %s0, 22
    %v60 = vld [vmem:[%s59] sm:$0x1]
    %61 = vrot.lane.b32.xlu0 %v60, 88
    %v62 = vpop.permute.xlu0 %61
    %vm63 = vcmask 753344
    %64 = vst.msk [vmem:[#allocation0] sm:$0x1] %vm63, %v62
    %s65 = scalar_lea.vmem %s0, 21
    %v66 = vld [vmem:[%s65] sm:$0x1]
    %67 = vrot.lane.b32.xlu0 %v66, 84
    %v68 = vpop.permute.xlu0 %67
    %vm69 = vcmask 720544
    %70 = vst.msk [vmem:[#allocation0] sm:$0x1] %vm69, %v68
    %s71 = scalar_lea.vmem %s0, 20
    %v72 = vld [vmem:[%s71] sm:$0x1]
    %73 = vrot.lane.b32.xlu0 %v72, 80
    %v74 = vpop.permute.xlu0 %73
    %vm75 = vcmask 687744
    %76 = vst.msk [vmem:[#allocation0] sm:$0x1] %vm75, %v74
    %s77 = scalar_lea.vmem %s0, 19
    %v78 = vld [vmem:[%s77] sm:$0x1]
    %79 = vrot.lane.b32.xlu0 %v78, 76
    %v80 = vpop.permute.xlu0 %79
    %vm81 = vcmask 654944
    %82 = vst.msk [vmem:[#allocation0] sm:$0x1] %vm81, %v80
    %s83 = scalar_lea.vmem %s0, 18
    %v84 = vld [vmem:[%s83] sm:$0x1]
    %85 = vrot.lane.b32.xlu0 %v84, 72
    %v86 = vpop.permute.xlu0 %85
    %vm87 = vcmask 622144
    %88 = vst.msk [vmem:[#allocation0] sm:$0x1] %vm87, %v86
    %s89 = scalar_lea.vmem %s0, 17
    %v90 = vld [vmem:[%s89] sm:$0x1]
    %91 = vrot.lane.b32.xlu0 %v90, 68
    %v92 = vpop.permute.xlu0 %91
    %vm93 = vcmask 589344
    %94 = vst.msk [vmem:[#allocation0] sm:$0x1] %vm93, %v92
    %s95 = scalar_lea.vmem %s0, 16
    %v96 = vld [vmem:[%s95] sm:$0x1]
    %97 = vrot.lane.b32.xlu0 %v96, 64
    %v98 = vpop.permute.xlu0 %97
    %vm99 = vcmask 556544
    %100 = vst.msk [vmem:[#allocation0] sm:$0x1] %vm99, %v98
    %s101 = scalar_lea.vmem %s0, 15
    %v102 = vld [vmem:[%s101] sm:$0x1]
    %103 = vrot.lane.b32.xlu0 %v102, 60
    %v104 = vpop.permute.xlu0 %103
    %vm105 = vcmask 523744
    %106 = vst.msk [vmem:[#allocation0] sm:$0x1] %vm105, %v104
    %s107 = scalar_lea.vmem %s0, 14
    %v108 = vld [vmem:[%s107] sm:$0x1]
    %109 = vrot.lane.b32.xlu0 %v108, 56
    %v110 = vpop.permute.xlu0 %109
    %vm111 = vcmask 490944
    %112 = vst.msk [vmem:[#allocation0] sm:$0x1] %vm111, %v110
    %s113 = scalar_lea.vmem %s0, 13
    %v114 = vld [vmem:[%s113] sm:$0x1]
    %115 = vrot.lane.b32.xlu0 %v114, 52
    %v116 = vpop.permute.xlu0 %115
    %vm117 = vcmask 458144
    %118 = vst.msk [vmem:[#allocation0] sm:$0x1] %vm117, %v116
    %s119 = scalar_lea.vmem %s0, 12
    %v120 = vld [vmem:[%s119] sm:$0x1]
    %121 = vrot.lane.b32.xlu0 %v120, 48
    %v122 = vpop.permute.xlu0 %121
    %vm123 = vcmask 425344
    %124 = vst.msk [vmem:[#allocation0] sm:$0x1] %vm123, %v122
    %s125 = scalar_lea.vmem %s0, 11
    %v126 = vld [vmem:[%s125] sm:$0x1]
    %127 = vrot.lane.b32.xlu0 %v126, 44
    %v128 = vpop.permute.xlu0 %127
    %vm129 = vcmask 392544
    %130 = vst.msk [vmem:[#allocation0] sm:$0x1] %vm129, %v128
    %s131 = scalar_lea.vmem %s0, 10
    %v132 = vld [vmem:[%s131] sm:$0x1]
    %133 = vrot.lane.b32.xlu0 %v132, 40
    %v134 = vpop.permute.xlu0 %133
    %vm135 = vcmask 359744
    %136 = vst.msk [vmem:[#allocation0] sm:$0x1] %vm135, %v134
    %s137 = scalar_lea.vmem %s0, 9
    %v138 = vld [vmem:[%s137] sm:$0x1]
    %139 = vrot.lane.b32.xlu0 %v138, 36
    %v140 = vpop.permute.xlu0 %139
    %vm141 = vcmask 326944
    %142 = vst.msk [vmem:[#allocation0] sm:$0x1] %vm141, %v140
    %s143 = scalar_lea.vmem %s0, 8
    %v144 = vld [vmem:[%s143] sm:$0x1]
    %145 = vrot.lane.b32.xlu0 %v144, 32
    %v146 = vpop.permute.xlu0 %145
    %vm147 = vcmask 294144
    %148 = vst.msk [vmem:[#allocation0] sm:$0x1] %vm147, %v146
    %s149 = scalar_lea.vmem %s0, 7
    %v150 = vld [vmem:[%s149] sm:$0x1]
    %151 = vrot.lane.b32.xlu0 %v150, 28
    %v152 = vpop.permute.xlu0 %151
    %vm153 = vcmask 261344
    %154 = vst.msk [vmem:[#allocation0] sm:$0x1] %vm153, %v152
    %s155 = scalar_lea.vmem %s0, 6
    %v156 = vld [vmem:[%s155] sm:$0x1]
    %157 = vrot.lane.b32.xlu0 %v156, 24
    %v158 = vpop.permute.xlu0 %157
    %vm159 = vcmask 228544
    %160 = vst.msk [vmem:[#allocation0] sm:$0x1] %vm159, %v158
    %s161 = scalar_lea.vmem %s0, 5
    %v162 = vld [vmem:[%s161] sm:$0x1]
    %163 = vrot.lane.b32.xlu0 %v162, 20
    %v164 = vpop.permute.xlu0 %163
    %vm165 = vcmask 195744
    %166 = vst.msk [vmem:[#allocation0] sm:$0x1] %vm165, %v164
    %s167 = scalar_lea.vmem %s0, 4
    %v168 = vld [vmem:[%s167] sm:$0x1]
    %169 = vrot.lane.b32.xlu0 %v168, 16
    %v170 = vpop.permute.xlu0 %169
    %vm171 = vcmask 162944
    %172 = vst.msk [vmem:[#allocation0] sm:$0x1] %vm171, %v170
    %s173 = scalar_lea.vmem %s0, 3
    %v174 = vld [vmem:[%s173] sm:$0x1]
    %175 = vrot.lane.b32.xlu0 %v174, 12
    %v176 = vpop.permute.xlu0 %175
    %vm177 = vcmask 130144
    %178 = vst.msk [vmem:[#allocation0] sm:$0x1] %vm177, %v176
    %s179 = scalar_lea.vmem %s0, 2
    %v180 = vld [vmem:[%s179] sm:$0x1]
    %181 = vrot.lane.b32.xlu0 %v180, 8
    %v182 = vpop.permute.xlu0 %181
    %vm183 = vcmask 97344
    %184 = vst.msk [vmem:[#allocation0] sm:$0x1] %vm183, %v182
    %s185 = scalar_lea.vmem %s0, 1
    %v186 = vld [vmem:[%s185] sm:$0x1]
    %187 = vrot.lane.b32.xlu0 %v186, 4
    %v188 = vpop.permute.xlu0 %187
    %vm189 = vcmask 64544
    %190 = vst.msk [vmem:[#allocation0] sm:$0x1] %vm189, %v188
    %s192 = sshllo.u32 0, 1
    %v194 = vld [vmem:[#allocation0] sm:%s192]
    %s195 = sshllo.u32 0, 1
    %196 = vst [vmem:[%s1] sm:%s195] %v194

// kernel: quantization_layer.1
$region0: #{quantization_layer.1}
  #allocation0 [shape = 'u32[]', space=smem, size = 0x4, offset = 0x4, fixed_abs, tag = 'smem constant byte address 0x4 - core index']
  #allocation1 [shape = 'u32[144,128]{1,0:T(1,128)}', space=vmem, size = 0x12000, scoped, tag = 'internal scratch']
  %s0 = inlined_call_operand.vmem [shape: f32[8,32], index: 0, kind: input, shape index: {}]
  %s1 = inlined_call_operand.vmem [shape: f32[32,128], index: 1, kind: input, shape index: {}]
  %s2 = inlined_call_operand.vmem [shape: s32[1,128], index: 2, kind: input, shape index: {}]
  %s3 = inlined_call_operand.vmem [shape: f32[8,128], index: 3, kind: output, shape index: {}]
  %s4 = sld [smem:[#allocation0]]
  $region22: #{quantization_layer.1} parent=0
    _
  %s6 = ssub.s32 1, %s4
  %s7 = scalar_select 0, %s6, %s4
  // Predicated region
  $region2: #{quantization_layer.1} parent=0 // pred_check
    _
  $region3: #{quantization_layer.1} parent=0 // pred_check_branch
    %9 = sbr.rel (0) target = $region5
  $region4: #{quantization_layer.1} parent=0 // pred_region
    _
  $region5: #{quantization_layer.1} parent=0 // pred_fallthru
    _
  // Predicated region
  $region6: #{quantization_layer.1} parent=0 // pred_check
    _
  $region7: #{quantization_layer.1} parent=0 // pred_check_branch
    %11 = sbr.rel (0) target = $region9
  $region8: #{quantization_layer.1} parent=0 // pred_region
    _
  $region9: #{quantization_layer.1} parent=0 // pred_fallthru
    _
  // Predicated region
  $region10: #{quantization_layer.1} parent=0 // pred_check
    _
  $region11: #{quantization_layer.1} parent=0 // pred_check_branch
    %13 = sbr.rel (0) target = $region13
  $region12: #{quantization_layer.1} parent=0 // pred_region
    _
  $region13: #{quantization_layer.1} parent=0 // pred_fallthru
    _
  %v14 = vld [vmem:[%s0] sm:$0xff]
  %v15 = vmul.f32 %v14, 16.0
  %v16 = vsub.f32 %v15, 0.5
  %v17 = vround.ne.pseudo %v16
  %v18 = vld [vmem:[%s1] sm:$0xff]
  %v19 = vld [vmem:[%s1 + $0x8] sm:$0xff]
  %v20 = vld [vmem:[%s1 + $0x10] sm:$0xff]
  %v21 = vld [vmem:[%s1 + $0x18] sm:$0xff]
  %vm22 = vcmask 261120
  %v24 = vsel %vm22, %v17, 0
  %26 = vmatprep.subr.mxu0 0.0
  %v27 = vand.u32 %v18, 4294901760
  %28 = vmatpush1.msra.mxu0 %v27
  %29 = vmatprep.subr.mxu0 0.0
  %v30 = vand.u32 %v19, 4294901760
  %31 = vmatpush1.msra.mxu0 %v30
  %32 = vmatprep.subr.mxu0 0.0
  %v33 = vand.u32 %v20, 4294901760
  %34 = vmatpush1.msra.mxu0 %v33
  %35 = vmatprep.subr.mxu0 0.0
  %v36 = vand.u32 %v21, 4294901760
  %37 = vmatpush1.msra.mxu0 %v36
  %38 = vmatprep.subr.mxu0 0.0
  %39 = vmatpush1.msra.mxu0 0.0
  %40 = vmatprep.subr.mxu0 0.0
  %41 = vmatpush1.msra.mxu0 0.0
  %42 = vmatprep.subr.mxu0 0.0
  %43 = vmatpush1.msra.mxu0 0.0
  %44 = vmatprep.subr.mxu0 0.0
  %45 = vmatpush1.msra.mxu0 0.0
  %46 = vmatprep.subr.mxu0 0.0
  %47 = vmatpush1.msra.mxu0 0.0
  %48 = vmatprep.subr.mxu0 0.0
  %49 = vmatpush1.msra.mxu0 0.0
  %50 = vmatprep.subr.mxu0 0.0
  %51 = vmatpush1.msra.mxu0 0.0
  %52 = vmatprep.subr.mxu0 0.0
  %53 = vmatpush1.msra.mxu0 0.0
  %54 = vmatprep.subr.mxu0 0.0
  %55 = vmatpush1.msra.mxu0 0.0
  %56 = vmatprep.subr.mxu0 0.0
  %57 = vmatpush1.msra.mxu0 0.0
  %58 = vmatprep.subr.mxu0 0.0
  %59 = vmatpush1.msra.mxu0 0.0
  %60 = vmatprep.subr.mxu0 0.0
  %61 = vmatpush1.msra.mxu0 0.0
  %62 = vmatprep.subr.mxu0 0.0
  %63 = vmatpush1.msra.mxu0 0.0
  %64 = vmatprep.subr.mxu0 0.0
  %65 = vmatpush1.msra.mxu0 0.0
  %66 = vmatprep.subr.mxu0 0.0
  %67 = vmatpush1.msra.mxu0 0.0
  %68 = vmatprep.subr.mxu0 0.0
  %69 = vmatpush1.msra.mxu0 0.0
  %70 = vmatprep.subr.mxu0 0.0
  %71 = vmatpush1.msra.mxu0 0.0
  %72 = vmatprep.subr.mxu0 0.0
  %73 = vmatpush1.msra.mxu0 0.0
  %74 = vmatprep.subr.mxu0 0.0
  %75 = vmatpush1.msra.mxu0 0.0
  %76 = vmatprep.subr.mxu0 0.0
  %77 = vmatpush1.msra.mxu0 0.0
  %78 = vmatprep.subr.mxu0 0.0
  %79 = vmatpush1.msra.mxu0 0.0
  %80 = vmatprep.subr.mxu0 0.0
  %81 = vmatpush1.msra.mxu0 0.0
  %82 = vmatprep.subr.mxu0 0.0
  %83 = vmatpush1.msra.mxu0 0.0
  %84 = vmatprep.subr.mxu0 0.0
  %85 = vmatpush1.msra.mxu0 0.0
  %86 = vmatprep.subr.mxu0 0.0
  %87 = vmatpush1.msra.mxu0 0.0
  %88 = vmatprep.subr.mxu0 0.0
  %89 = vmatpush1.msra.mxu0 0.0
  %90 = vmatprep.subr.mxu0 0.0
  %91 = vmatpush1.msra.mxu0 0.0
  %92 = vmatprep.subr.mxu0 0.0
  %93 = vmatpush1.msra.mxu0 0.0
  %94 = vmatprep.mubr.f32.mxu0 0.0
  %v95 = vand.u32 %v24, 4294901760
  %v96 = vsub.f32 %v24, %v95
  %v97 = vand.u32 %v96, 4294901760
  %v98 = vsub.f32 %v96, %v97
  %v99 = vand.u32 %v98, 4294901760
  %100 = vmatmul.mubr.f32.gmra.mrb[0].mxu0 %v99
  %v101 = vpop.f32.mrb[0].mxu0
  %v102 = vadd.f32 0.0, %v101
  %v103 = vpop.f32.mrb[0].mxu0
  %104 = vdwg.mxu0
  %105 = vmatprep.subr.mxu0 0.0
  %v106 = vand.u32 %v18, 4294901760
  %v107 = vsub.f32 %v18, %v106
  %v108 = vand.u32 %v107, 4294901760
  %v109 = vsub.f32 %v107, %v108
  %v110 = vand.u32 %v109, 4294901760
  %111 = vmatpush1.msra.mxu0 %v110
  %112 = vmatprep.subr.mxu0 0.0
  %v113 = vand.u32 %v19, 4294901760
  %v114 = vsub.f32 %v19, %v113
  %v115 = vand.u32 %v114, 4294901760
  %v116 = vsub.f32 %v114, %v115
  %v117 = vand.u32 %v116, 4294901760
  %118 = vmatpush1.msra.mxu0 %v117
  %119 = vmatprep.subr.mxu0 0.0
  %v120 = vand.u32 %v20, 4294901760
  %v121 = vsub.f32 %v20, %v120
  %v122 = vand.u32 %v121, 4294901760
  %v123 = vsub.f32 %v121, %v122
  %v124 = vand.u32 %v123, 4294901760
  %125 = vmatpush1.msra.mxu0 %v124
  %126 = vmatprep.subr.mxu0 0.0
  %v127 = vand.u32 %v21, 4294901760
  %v128 = vsub.f32 %v21, %v127
  %v129 = vand.u32 %v128, 4294901760
  %v130 = vsub.f32 %v128, %v129
  %v131 = vand.u32 %v130, 4294901760
  %132 = vmatpush1.msra.mxu0 %v131
  %133 = vmatprep.subr.mxu0 0.0
  %134 = vmatpush1.msra.mxu0 0.0
  %135 = vmatprep.subr.mxu0 0.0
  %136 = vmatpush1.msra.mxu0 0.0
  %137 = vmatprep.subr.mxu0 0.0
  %138 = vmatpush1.msra.mxu0 0.0
  %139 = vmatprep.subr.mxu0 0.0
  %140 = vmatpush1.msra.mxu0 0.0
  %141 = vmatprep.subr.mxu0 0.0
  %142 = vmatpush1.msra.mxu0 0.0
  %143 = vmatprep.subr.mxu0 0.0
  %144 = vmatpush1.msra.mxu0 0.0
  %145 = vmatprep.subr.mxu0 0.0
  %146 = vmatpush1.msra.mxu0 0.0
  %147 = vmatprep.subr.mxu0 0.0
  %148 = vmatpush1.msra.mxu0 0.0
  %149 = vmatprep.subr.mxu0 0.0
  %150 = vmatpush1.msra.mxu0 0.0
  %151 = vmatprep.subr.mxu0 0.0
  %152 = vmatpush1.msra.mxu0 0.0
  %153 = vmatprep.subr.mxu0 0.0
  %154 = vmatpush1.msra.mxu0 0.0
  %155 = vmatprep.subr.mxu0 0.0
  %156 = vmatpush1.msra.mxu0 0.0
  %157 = vmatprep.subr.mxu0 0.0
  %158 = vmatpush1.msra.mxu0 0.0
  %159 = vmatprep.subr.mxu0 0.0
  %160 = vmatpush1.msra.mxu0 0.0
  %161 = vmatprep.subr.mxu0 0.0
  %162 = vmatpush1.msra.mxu0 0.0
  %163 = vmatprep.subr.mxu0 0.0
  %164 = vmatpush1.msra.mxu0 0.0
  %165 = vmatprep.subr.mxu0 0.0
  %166 = vmatpush1.msra.mxu0 0.0
  %167 = vmatprep.subr.mxu0 0.0
  %168 = vmatpush1.msra.mxu0 0.0
  %169 = vmatprep.subr.mxu0 0.0
  %170 = vmatpush1.msra.mxu0 0.0
  %171 = vmatprep.subr.mxu0 0.0
  %172 = vmatpush1.msra.mxu0 0.0
  %173 = vmatprep.subr.mxu0 0.0
  %174 = vmatpush1.msra.mxu0 0.0
  %175 = vmatprep.subr.mxu0 0.0
  %176 = vmatpush1.msra.mxu0 0.0
  %177 = vmatprep.subr.mxu0 0.0
  %178 = vmatpush1.msra.mxu0 0.0
  %179 = vmatprep.subr.mxu0 0.0
  %180 = vmatpush1.msra.mxu0 0.0
  %181 = vmatprep.subr.mxu0 0.0
  %182 = vmatpush1.msra.mxu0 0.0
  %183 = vmatprep.subr.mxu0 0.0
  %184 = vmatpush1.msra.mxu0 0.0
  %185 = vmatprep.subr.mxu0 0.0
  %186 = vmatpush1.msra.mxu0 0.0
  %187 = vmatprep.subr.mxu0 0.0
  %188 = vmatpush1.msra.mxu0 0.0
  %189 = vmatprep.mubr.f32.mxu0 0.0
  %v190 = vand.u32 %v24, 4294901760
  %191 = vmatmul.mubr.f32.gmra.mrb[0].mxu0 %v190
  %v192 = vpop.f32.mrb[0].mxu0
  %v193 = vadd.f32 %v102, %v192
  %v194 = vpop.f32.mrb[0].mxu0
  %195 = vdwg.mxu0
  %196 = vmatprep.subr.mxu0 0.0
  %v197 = vand.u32 %v18, 4294901760
  %v198 = vsub.f32 %v18, %v197
  %199 = vmatpush1.msra.mxu0 %v198
  %200 = vmatprep.subr.mxu0 0.0
  %v201 = vand.u32 %v19, 4294901760
  %v202 = vsub.f32 %v19, %v201
  %203 = vmatpush1.msra.mxu0 %v202
  %204 = vmatprep.subr.mxu0 0.0
  %v205 = vand.u32 %v20, 4294901760
  %v206 = vsub.f32 %v20, %v205
  %207 = vmatpush1.msra.mxu0 %v206
  %208 = vmatprep.subr.mxu0 0.0
  %v209 = vand.u32 %v21, 4294901760
  %v210 = vsub.f32 %v21, %v209
  %211 = vmatpush1.msra.mxu0 %v210
  %212 = vmatprep.subr.mxu0 0.0
  %213 = vmatpush1.msra.mxu0 0.0
  %214 = vmatprep.subr.mxu0 0.0
  %215 = vmatpush1.msra.mxu0 0.0
  %216 = vmatprep.subr.mxu0 0.0
  %217 = vmatpush1.msra.mxu0 0.0
  %218 = vmatprep.subr.mxu0 0.0
  %219 = vmatpush1.msra.mxu0 0.0
  %220 = vmatprep.subr.mxu0 0.0
  %221 = vmatpush1.msra.mxu0 0.0
  %222 = vmatprep.subr.mxu0 0.0
  %223 = vmatpush1.msra.mxu0 0.0
  %224 = vmatprep.subr.mxu0 0.0
  %225 = vmatpush1.msra.mxu0 0.0
  %226 = vmatprep.subr.mxu0 0.0
  %227 = vmatpush1.msra.mxu0 0.0
  %228 = vmatprep.subr.mxu0 0.0
  %229 = vmatpush1.msra.mxu0 0.0
  %230 = vmatprep.subr.mxu0 0.0
  %231 = vmatpush1.msra.mxu0 0.0
  %232 = vmatprep.subr.mxu0 0.0
  %233 = vmatpush1.msra.mxu0 0.0
  %234 = vmatprep.subr.mxu0 0.0
  %235 = vmatpush1.msra.mxu0 0.0
  %236 = vmatprep.subr.mxu0 0.0
  %237 = vmatpush1.msra.mxu0 0.0
  %238 = vmatprep.subr.mxu0 0.0
  %239 = vmatpush1.msra.mxu0 0.0
  %240 = vmatprep.subr.mxu0 0.0
  %241 = vmatpush1.msra.mxu0 0.0
  %242 = vmatprep.subr.mxu0 0.0
  %243 = vmatpush1.msra.mxu0 0.0
  %244 = vmatprep.subr.mxu0 0.0
  %245 = vmatpush1.msra.mxu0 0.0
  %246 = vmatprep.subr.mxu0 0.0
  %247 = vmatpush1.msra.mxu0 0.0
  %248 = vmatprep.subr.mxu0 0.0
  %249 = vmatpush1.msra.mxu0 0.0
  %250 = vmatprep.subr.mxu0 0.0
  %251 = vmatpush1.msra.mxu0 0.0
  %252 = vmatprep.subr.mxu0 0.0
  %253 = vmatpush1.msra.mxu0 0.0
  %254 = vmatprep.subr.mxu0 0.0
  %255 = vmatpush1.msra.mxu0 0.0
  %256 = vmatprep.subr.mxu0 0.0
  %257 = vmatpush1.msra.mxu0 0.0
  %258 = vmatprep.subr.mxu0 0.0
  %259 = vmatpush1.msra.mxu0 0.0
  %260 = vmatprep.subr.mxu0 0.0
  %261 = vmatpush1.msra.mxu0 0.0
  %262 = vmatprep.subr.mxu0 0.0
  %263 = vmatpush1.msra.mxu0 0.0
  %264 = vmatprep.subr.mxu0 0.0
  %265 = vmatpush1.msra.mxu0 0.0
  %266 = vmatprep.subr.mxu0 0.0
  %267 = vmatpush1.msra.mxu0 0.0
  %268 = vmatprep.mubr.f32.mxu0 0.0
  %v269 = vand.u32 %v24, 4294901760
  %v270 = vsub.f32 %v24, %v269
  %271 = vmatmul.mubr.f32.gmra.mrb[0].mxu0 %v270
  %v272 = vpop.f32.mrb[0].mxu0
  %v273 = vadd.f32 %v193, %v272
  %v274 = vpop.f32.mrb[0].mxu0
  %275 = vdwg.mxu0
  %276 = vmatprep.subr.mxu0 0.0
  %v277 = vand.u32 %v18, 4294901760
  %278 = vmatpush1.msra.mxu0 %v277
  %279 = vmatprep.subr.mxu0 0.0
  %v280 = vand.u32 %v19, 4294901760
  %281 = vmatpush1.msra.mxu0 %v280
  %282 = vmatprep.subr.mxu0 0.0
  %v283 = vand.u32 %v20, 4294901760
  %284 = vmatpush1.msra.mxu0 %v283
  %285 = vmatprep.subr.mxu0 0.0
  %v286 = vand.u32 %v21, 4294901760
  %287 = vmatpush1.msra.mxu0 %v286
  %288 = vmatprep.subr.mxu0 0.0
  %289 = vmatpush1.msra.mxu0 0.0
  %290 = vmatprep.subr.mxu0 0.0
  %291 = vmatpush1.msra.mxu0 0.0
  %292 = vmatprep.subr.mxu0 0.0
  %293 = vmatpush1.msra.mxu0 0.0
  %294 = vmatprep.subr.mxu0 0.0
  %295 = vmatpush1.msra.mxu0 0.0
  %296 = vmatprep.subr.mxu0 0.0
  %297 = vmatpush1.msra.mxu0 0.0
  %298 = vmatprep.subr.mxu0 0.0
  %299 = vmatpush1.msra.mxu0 0.0
  %300 = vmatprep.subr.mxu0 0.0
  %301 = vmatpush1.msra.mxu0 0.0
  %302 = vmatprep.subr.mxu0 0.0
  %303 = vmatpush1.msra.mxu0 0.0
  %304 = vmatprep.subr.mxu0 0.0
  %305 = vmatpush1.msra.mxu0 0.0
  %306 = vmatprep.subr.mxu0 0.0
  %307 = vmatpush1.msra.mxu0 0.0
  %308 = vmatprep.subr.mxu0 0.0
  %309 = vmatpush1.msra.mxu0 0.0
  %310 = vmatprep.subr.mxu0 0.0
  %311 = vmatpush1.msra.mxu0 0.0
  %312 = vmatprep.subr.mxu0 0.0
  %313 = vmatpush1.msra.mxu0 0.0
  %314 = vmatprep.subr.mxu0 0.0
  %315 = vmatpush1.msra.mxu0 0.0
  %316 = vmatprep.subr.mxu0 0.0
  %317 = vmatpush1.msra.mxu0 0.0
  %318 = vmatprep.subr.mxu0 0.0
  %319 = vmatpush1.msra.mxu0 0.0
  %320 = vmatprep.subr.mxu0 0.0
  %321 = vmatpush1.msra.mxu0 0.0
  %322 = vmatprep.subr.mxu0 0.0
  %323 = vmatpush1.msra.mxu0 0.0
  %324 = vmatprep.subr.mxu0 0.0
  %325 = vmatpush1.msra.mxu0 0.0
  %326 = vmatprep.subr.mxu0 0.0
  %327 = vmatpush1.msra.mxu0 0.0
  %328 = vmatprep.subr.mxu0 0.0
  %329 = vmatpush1.msra.mxu0 0.0
  %330 = vmatprep.subr.mxu0 0.0
  %331 = vmatpush1.msra.mxu0 0.0
  %332 = vmatprep.subr.mxu0 0.0
  %333 = vmatpush1.msra.mxu0 0.0
  %334 = vmatprep.subr.mxu0 0.0
  %335 = vmatpush1.msra.mxu0 0.0
  %336 = vmatprep.subr.mxu0 0.0
  %337 = vmatpush1.msra.mxu0 0.0
  %338 = vmatprep.subr.mxu0 0.0
  %339 = vmatpush1.msra.mxu0 0.0
  %340 = vmatprep.subr.mxu0 0.0
  %341 = vmatpush1.msra.mxu0 0.0
  %342 = vmatprep.subr.mxu0 0.0
  %343 = vmatpush1.msra.mxu0 0.0
  %344 = vmatprep.mubr.f32.mxu0 0.0
  %v345 = vand.u32 %v24, 4294901760
  %v346 = vsub.f32 %v24, %v345
  %v347 = vand.u32 %v346, 4294901760
  %348 = vmatmul.mubr.f32.gmra.mrb[0].mxu0 %v347
  %v349 = vpop.f32.mrb[0].mxu0
  %v350 = vadd.f32 %v273, %v349
  %v351 = vpop.f32.mrb[0].mxu0
  %352 = vdwg.mxu0
  %353 = vmatprep.subr.mxu0 0.0
  %v354 = vand.u32 %v18, 4294901760
  %v355 = vsub.f32 %v18, %v354
  %v356 = vand.u32 %v355, 4294901760
  %357 = vmatpush1.msra.mxu0 %v356
  %358 = vmatprep.subr.mxu0 0.0
  %v359 = vand.u32 %v19, 4294901760
  %v360 = vsub.f32 %v19, %v359
  %v361 = vand.u32 %v360, 4294901760
  %362 = vmatpush1.msra.mxu0 %v361
  %363 = vmatprep.subr.mxu0 0.0
  %v364 = vand.u32 %v20, 4294901760
  %v365 = vsub.f32 %v20, %v364
  %v366 = vand.u32 %v365, 4294901760
  %367 = vmatpush1.msra.mxu0 %v366
  %368 = vmatprep.subr.mxu0 0.0
  %v369 = vand.u32 %v21, 4294901760
  %v370 = vsub.f32 %v21, %v369
  %v371 = vand.u32 %v370, 4294901760
  %372 = vmatpush1.msra.mxu0 %v371
  %373 = vmatprep.subr.mxu0 0.0
  %374 = vmatpush1.msra.mxu0 0.0
  %375 = vmatprep.subr.mxu0 0.0
  %376 = vmatpush1.msra.mxu0 0.0
  %377 = vmatprep.subr.mxu0 0.0
  %378 = vmatpush1.msra.mxu0 0.0
  %379 = vmatprep.subr.mxu0 0.0
  %380 = vmatpush1.msra.mxu0 0.0
  %381 = vmatprep.subr.mxu0 0.0
  %382 = vmatpush1.msra.mxu0 0.0
  %383 = vmatprep.subr.mxu0 0.0
  %384 = vmatpush1.msra.mxu0 0.0
  %385 = vmatprep.subr.mxu0 0.0
  %386 = vmatpush1.msra.mxu0 0.0
  %387 = vmatprep.subr.mxu0 0.0
  %388 = vmatpush1.msra.mxu0 0.0
  %389 = vmatprep.subr.mxu0 0.0
  %390 = vmatpush1.msra.mxu0 0.0
  %391 = vmatprep.subr.mxu0 0.0
  %392 = vmatpush1.msra.mxu0 0.0
  %393 = vmatprep.subr.mxu0 0.0
  %394 = vmatpush1.msra.mxu0 0.0
  %395 = vmatprep.subr.mxu0 0.0
  %396 = vmatpush1.msra.mxu0 0.0
  %397 = vmatprep.subr.mxu0 0.0
  %398 = vmatpush1.msra.mxu0 0.0
  %399 = vmatprep.subr.mxu0 0.0
  %400 = vmatpush1.msra.mxu0 0.0
  %401 = vmatprep.subr.mxu0 0.0
  %402 = vmatpush1.msra.mxu0 0.0
  %403 = vmatprep.subr.mxu0 0.0
  %404 = vmatpush1.msra.mxu0 0.0
  %405 = vmatprep.subr.mxu0 0.0
  %406 = vmatpush1.msra.mxu0 0.0
  %407 = vmatprep.subr.mxu0 0.0
  %408 = vmatpush1.msra.mxu0 0.0
  %409 = vmatprep.subr.mxu0 0.0
  %410 = vmatpush1.msra.mxu0 0.0
  %411 = vmatprep.subr.mxu0 0.0
  %412 = vmatpush1.msra.mxu0 0.0
  %413 = vmatprep.subr.mxu0 0.0
  %414 = vmatpush1.msra.mxu0 0.0
  %415 = vmatprep.subr.mxu0 0.0
  %416 = vmatpush1.msra.mxu0 0.0
  %417 = vmatprep.subr.mxu0 0.0
  %418 = vmatpush1.msra.mxu0 0.0
  %419 = vmatprep.subr.mxu0 0.0
  %420 = vmatpush1.msra.mxu0 0.0
  %421 = vmatprep.subr.mxu0 0.0
  %422 = vmatpush1.msra.mxu0 0.0
  %423 = vmatprep.subr.mxu0 0.0
  %424 = vmatpush1.msra.mxu0 0.0
  %425 = vmatprep.subr.mxu0 0.0
  %426 = vmatpush1.msra.mxu0 0.0
  %427 = vmatprep.subr.mxu0 0.0
  %428 = vmatpush1.msra.mxu0 0.0
  %429 = vmatprep.mubr.f32.mxu0 0.0
  %v430 = vand.u32 %v24, 4294901760
  %431 = vmatmul.mubr.f32.gmra.mrb[0].mxu0 %v430
  %v432 = vpop.f32.mrb[0].mxu0
  %v433 = vadd.f32 %v350, %v432
  %v434 = vpop.f32.mrb[0].mxu0
  %435 = vdwg.mxu0
  %436 = vmatprep.subr.mxu0 0.0
  %v437 = vand.u32 %v18, 4294901760
  %438 = vmatpush1.msra.mxu0 %v437
  %439 = vmatprep.subr.mxu0 0.0
  %v440 = vand.u32 %v19, 4294901760
  %441 = vmatpush1.msra.mxu0 %v440
  %442 = vmatprep.subr.mxu0 0.0
  %v443 = vand.u32 %v20, 4294901760
  %444 = vmatpush1.msra.mxu0 %v443
  %445 = vmatprep.subr.mxu0 0.0
  %v446 = vand.u32 %v21, 4294901760
  %447 = vmatpush1.msra.mxu0 %v446
  %448 = vmatprep.subr.mxu0 0.0
  %449 = vmatpush1.msra.mxu0 0.0
  %450 = vmatprep.subr.mxu0 0.0
  %451 = vmatpush1.msra.mxu0 0.0
  %452 = vmatprep.subr.mxu0 0.0
  %453 = vmatpush1.msra.mxu0 0.0
  %454 = vmatprep.subr.mxu0 0.0
  %455 = vmatpush1.msra.mxu0 0.0
  %456 = vmatprep.subr.mxu0 0.0
  %457 = vmatpush1.msra.mxu0 0.0
  %458 = vmatprep.subr.mxu0 0.0
  %459 = vmatpush1.msra.mxu0 0.0
  %460 = vmatprep.subr.mxu0 0.0
  %461 = vmatpush1.msra.mxu0 0.0
  %462 = vmatprep.subr.mxu0 0.0
  %463 = vmatpush1.msra.mxu0 0.0
  %464 = vmatprep.subr.mxu0 0.0
  %465 = vmatpush1.msra.mxu0 0.0
  %466 = vmatprep.subr.mxu0 0.0
  %467 = vmatpush1.msra.mxu0 0.0
  %468 = vmatprep.subr.mxu0 0.0
  %469 = vmatpush1.msra.mxu0 0.0
  %470 = vmatprep.subr.mxu0 0.0
  %471 = vmatpush1.msra.mxu0 0.0
  %472 = vmatprep.subr.mxu0 0.0
  %473 = vmatpush1.msra.mxu0 0.0
  %474 = vmatprep.subr.mxu0 0.0
  %475 = vmatpush1.msra.mxu0 0.0
  %476 = vmatprep.subr.mxu0 0.0
  %477 = vmatpush1.msra.mxu0 0.0
  %478 = vmatprep.subr.mxu0 0.0
  %479 = vmatpush1.msra.mxu0 0.0
  %480 = vmatprep.subr.mxu0 0.0
  %481 = vmatpush1.msra.mxu0 0.0
  %482 = vmatprep.subr.mxu0 0.0
  %483 = vmatpush1.msra.mxu0 0.0
  %484 = vmatprep.subr.mxu0 0.0
  %485 = vmatpush1.msra.mxu0 0.0
  %486 = vmatprep.subr.mxu0 0.0
  %487 = vmatpush1.msra.mxu0 0.0
  %488 = vmatprep.subr.mxu0 0.0
  %489 = vmatpush1.msra.mxu0 0.0
  %490 = vmatprep.subr.mxu0 0.0
  %491 = vmatpush1.msra.mxu0 0.0
  %492 = vmatprep.subr.mxu0 0.0
  %493 = vmatpush1.msra.mxu0 0.0
  %494 = vmatprep.subr.mxu0 0.0
  %495 = vmatpush1.msra.mxu0 0.0
  %496 = vmatprep.subr.mxu0 0.0
  %497 = vmatpush1.msra.mxu0 0.0
  %498 = vmatprep.subr.mxu0 0.0
  %499 = vmatpush1.msra.mxu0 0.0
  %500 = vmatprep.subr.mxu0 0.0
  %501 = vmatpush1.msra.mxu0 0.0
  %502 = vmatprep.subr.mxu0 0.0
  %503 = vmatpush1.msra.mxu0 0.0
  %504 = vmatprep.mubr.f32.mxu0 0.0
  %v505 = vand.u32 %v24, 4294901760
  %506 = vmatmul.mubr.f32.gmra.mrb[0].mxu0 %v505
  %v507 = vpop.f32.mrb[0].mxu0
  %v508 = vadd.f32 %v433, %v507
  %v509 = vpop.f32.mrb[0].mxu0
  %510 = vdwg.mxu0
  %v511 = vcvt.f32.s32.to.zero.pseudo %v508
  %v512 = vld [vmem:[%s2] sm:$0x1]
  %v513 = vlaneseq
  %v514 = vshrl.u32 %v513, 7
  %v515 = vsub.s32 0, %v514
  %v516 = vrot.slane %v512, %v515
  %v517 = vshra.s32 %v511, %v516
  %v518 = vand.u32 %v517, 1
  %v519 = vcvt.s32.f32 %v518
  %520 = vst [vmem:[%s3] sm:$0xff] %v519
  // Predicated region
  $region14: #{quantization_layer.1} parent=0 // pred_check
    _
  $region15: #{quantization_layer.1} parent=0 // pred_check_branch
    %522 = sbr.rel (0) target = $region17
  $region16: #{quantization_layer.1} parent=0 // pred_region
    _
  $region17: #{quantization_layer.1} parent=0 // pred_fallthru
    _
  // Predicated region
  $region18: #{quantization_layer.1} parent=0 // pred_check
    _
  $region19: #{quantization_layer.1} parent=0 // pred_check_branch
    %524 = sbr.rel (0) target = $region21
  $region20: #{quantization_layer.1} parent=0 // pred_region
    _
  $region21: #{quantization_layer.1} parent=0 // pred_fallthru
    _

</llo_original>
